<compile_context>
chip_gen: v7x
topology: tpu7x:2x2x1
jax: 0.10.0
libtpu: 0.0.40
codegen_flags: <defaults>
</compile_context>

<pallas_src>
import functools

import jax
import jax.numpy as jnp
from jax import lax
from jax.experimental import pallas as pl
from jax.experimental.pallas import tpu as pltpu


# ----------------------------------------------------------------------------
# In-kernel math (shared by both tiling paths)
# ----------------------------------------------------------------------------
def _block_row_sums(x0, x1, y, keep_input_dtype):
    """Per-row sums of 2-class cross entropy over a (rows, cols) block.

    loss = logsumexp(x0, x1) - x_true = softplus(x_other - x_true)
         = max(z, 0) + log1p(exp(-|z|)),   z = where(y == 0, x1 - x0, x0 - x1)
    """
    if not keep_input_dtype:
        x0 = x0.astype(jnp.float32)
        x1 = x1.astype(jnp.float32)
    d = x1 - x0                          # single subtraction; negate for class 1
    z = jnp.where(y == 0, d, -d)         # x_other - x_true
    # Cheap VALU ops stay in the compute dtype (bf16 on v6e/v7x when inputs are
    # bf16); transcendentals and accumulation in f32.
    pos = jnp.maximum(z, jnp.zeros_like(z)).astype(jnp.float32)
    neg_abs = (-jnp.abs(z)).astype(jnp.float32)
    loss = pos + jnp.log1p(jnp.exp(neg_abs))            # (rows, cols) f32
    return jnp.sum(loss, axis=-1, keepdims=True)        # (rows, 1) two-level sum


def _masked_total(row_sums, n_rows, need_row_mask):
    """Sum per-row sums, zeroing rows past N (ragged last row-tile)."""
    if need_row_mask:
        tile_rows = row_sums.shape[0]
        row = lax.broadcasted_iota(jnp.int32, row_sums.shape, 0)   # (rows, 1)
        valid = pl.program_id(0) * tile_rows + row < n_rows
        row_sums = jnp.where(valid, row_sums, 0.0)   # select: NaN-safe vs garbage
    return jnp.sum(row_sums)


def _ce_tiled_kernel(x0_ref, x1_ref, y_ref, out_ref, *, n_rows, need_row_mask,
                     keep_input_dtype):
    # x0_ref / x1_ref: (tile_n, tile_hw) class-0 / class-1 logits (lane-aligned)
    # y_ref          : (tile_n, tile_hw) integer class ids
    # out_ref        : (1, 1, 8, 128)    lane-dense per-(i, j) partial sum
    row_sums = _block_row_sums(x0_ref[...], x1_ref[...], y_ref[...],
                               keep_input_dtype)
    out_ref[...] = jnp.broadcast_to(
        _masked_total(row_sums, n_rows, need_row_mask), out_ref.shape)


def _ce_rowtiled_kernel(logits_ref, y_ref, out_ref, *, hw, n_rows, need_row_mask,
                        keep_input_dtype):
    # logits_ref: (tile_n, 2*hw)  [class-0 plane | class-1 plane]
    # y_ref     : (tile_n, hw)
    # out_ref   : (1, 8, 128)
    x0 = logits_ref[:, pl.ds(0, hw)]
    x1 = logits_ref[:, pl.ds(hw, hw)]
    row_sums = _block_row_sums(x0, x1, y_ref[...], keep_input_dtype)
    out_ref[...] = jnp.broadcast_to(
        _masked_total(row_sums, n_rows, need_row_mask), out_ref.shape)


# ----------------------------------------------------------------------------
# Host-side tile / VMEM sizing
# ----------------------------------------------------------------------------
def _round_up(x, m):
    return ((x + m - 1) // m) * m


def _vmem_capacity_bytes():
    try:
        return int(pltpu.get_tpu_info().vmem_capacity_bytes)
    except Exception:
        return 64 << 20      # conservative (v7x-sized) fallback


def _use_input_dtype_math(dtype):
    """Keep cheap elementwise math in bf16 only on chips with bf16 VALU (v6e+)."""
    if jnp.dtype(dtype) != jnp.dtype(jnp.bfloat16):
        return False
    try:
        kind = jax.devices()[0].device_kind.lower()
    except Exception:
        return False
    return not any(tag in kind for tag in ("v2", "v3", "v4", "v5"))


def _pick_row_tile(n, rows_budget):
    """tile_n: a multiple of 8 (or == n), near the byte budget, preferring a
    divisor of n (so the ragged-row mask is never emitted) and guaranteeing
    >= 2 row tiles when n >= 32 so both v7x TensorCores get work."""
    if n <= 8:
        return n
    rows_budget = max(8, rows_budget)
    if n >= 32:
        rows_budget = min(rows_budget, _round_up(-(-n // 2), 16))
    if rows_budget >= n:
        return n
    cand = max(8, (rows_budget // 8) * 8)
    if cand >= 64:
        cand = (cand // 32) * 32          # full int8-label sublane packing
    d = cand
    while d >= max(8, cand // 2):
        if n % d == 0:
            return d
        d -= 8
    return cand


def _pick_hw_tile(hw, max_cols):
    """tile_hw: a multiple of 128 dividing hw, as large as possible <= max_cols
    (hw is a multiple of 128 here)."""
    if hw <= max_cols:
        return hw
    q = hw // 128
    qmax = max(1, min(q, max_cols // 128))
    for dq in range(qmax, 0, -1):
        if q % dq == 0:
            return dq * 128
    return 128


# ----------------------------------------------------------------------------
# Public wrapper
# ----------------------------------------------------------------------------
def cross_entropy_with_logits(logits_nchw, label_n1hw, *, max_block_bytes=None):
    """Pallas-TPU equivalent of CrossEntropyWithLogits.forward.

    logits_nchw: (N, 2, H, W), any float dtype (streamed as-is; cast in VMEM).
    label_n1hw : (N, 1, H, W), any integer dtype (int8 recommended: labels are
                 pure DMA cost on this bandwidth-bound kernel).
    Returns the scalar float32 mean cross-entropy loss.
    NOTE: labels are treated as {0,1} class ids (module contract, reshape(-1,2));
          any label != 0 selects class 1; no ignore_index.
    """
    n, c, h, w = logits_nchw.shape
    if c != 2:
        raise ValueError("module reshapes logits to (-1, 2); need C == 2")
    if label_n1hw.shape != (n, 1, h, w):
        raise ValueError("label must be (N, 1, H, W)")
    hw = h * w

    # Free reshapes: NCHW keeps the two class planes contiguous per image.
    logits2 = logits_nchw.reshape(n, c * hw)     # [class0 | class1] per row
    labels2 = label_n1hw.reshape(n, hw)          # caller's (narrow) label dtype

    lsz = jnp.dtype(logits_nchw.dtype).itemsize
    ysz = jnp.dtype(label_n1hw.dtype).itemsize
    bytes_per_sample = 2 * lsz + ysz

    # Generation-aware block sizing: double-buffered inputs use ~1/3 of VMEM.
    vmem_cap = _vmem_capacity_bytes()
    if max_block_bytes is None:
        max_block_bytes = vmem_cap // 6          # per-step input bytes
    elems_budget = max(1, max_block_bytes // bytes_per_sample)
    vmem_limit = int(min(vmem_cap * 3 // 4,
                         max(2 * max_block_bytes + (8 << 20), 32 << 20)))

    keep_dt = _use_input_dtype_math(logits_nchw.dtype)
    m_total = n * hw

    if hw % 128 == 0:
        # ---- lane-aligned 2-D (rows x HW) tiling; class planes as two views ----
        if 8 * hw <= elems_budget:
            tile_hw = hw
            tile_n = _pick_row_tile(n, elems_budget // hw)
        else:
            tile_n = min(n, 8)
            tile_hw = _pick_hw_tile(hw, elems_budget // max(tile_n, 1))
        grid_n = pl.cdiv(n, tile_n)
        grid_hw = hw // tile_hw                  # tile_hw always divides hw
        need_row_mask = (n % tile_n) != 0

        kernel = functools.partial(
            _ce_tiled_kernel, n_rows=n, need_row_mask=need_row_mask,
            keep_input_dtype=keep_dt)
        partials = pl.pallas_call(
            kernel,
            out_shape=jax.ShapeDtypeStruct((grid_n, grid_hw, 8, 128), jnp.float32),
            grid_spec=pltpu.PrefetchScalarGridSpec(
                num_scalar_prefetch=0,
                grid=(grid_n, grid_hw),
                in_specs=[
                    # Same HBM buffer, two lane-aligned views: class-0 / class-1.
                    pl.BlockSpec((tile_n, tile_hw), lambda i, j: (i, j)),
                    pl.BlockSpec((tile_n, tile_hw), lambda i, j: (i, j + grid_hw)),
                    pl.BlockSpec((tile_n, tile_hw), lambda i, j: (i, j)),
                ],
                out_specs=pl.BlockSpec((1, 1, 8, 128), lambda i, j: (i, j, 0, 0)),
            ),
            compiler_params=pltpu.CompilerParams(
                dimension_semantics=("parallel", "parallel"),
                vmem_limit_bytes=vmem_limit,
            ),
        )(logits2, logits2, labels2)
        total = jnp.sum(partials[:, :, 0, 0])
    else:
        # ---- fallback: full-width row tiles (H*W not a multiple of 128) ----
        # TODO(synk): the class-1 slice inside the kernel starts at an unaligned
        #             lane offset; padding H*W to a multiple of 128 upstream
        #             enables the lane-aligned 2-D path above.
        row_bytes = hw * bytes_per_sample
        tile_n = _pick_row_tile(n, max(1, max_block_bytes // row_bytes))
        grid_n = pl.cdiv(n, tile_n)
        need_row_mask = (n % tile_n) != 0

        kernel = functools.partial(
            _ce_rowtiled_kernel, hw=hw, n_rows=n, need_row_mask=need_row_mask,
            keep_input_dtype=keep_dt)
        partials = pl.pallas_call(
            kernel,
            out_shape=jax.ShapeDtypeStruct((grid_n, 8, 128), jnp.float32),
            grid_spec=pltpu.PrefetchScalarGridSpec(
                num_scalar_prefetch=0,
                grid=(grid_n,),
                in_specs=[
                    pl.BlockSpec((tile_n, c * hw), lambda i: (i, 0)),
                    pl.BlockSpec((tile_n, hw), lambda i: (i, 0)),
                ],
                out_specs=pl.BlockSpec((1, 8, 128), lambda i: (i, 0, 0)),
            ),
            compiler_params=pltpu.CompilerParams(
                dimension_semantics=("parallel",),
                vmem_limit_bytes=vmem_limit,
            ),
        )(logits2, labels2)
        total = jnp.sum(partials[:, 0, 0])

    # Tiny final reduction + mean over the TRUE sample count (plain JAX).
    return total / jnp.float32(m_total)


# ----------------------------------------------------------------------------
# Pure-JAX reference of the PyTorch module (for sanity checks)
# ----------------------------------------------------------------------------
def _reference(logits_nchw, label_n1hw):
    c = logits_nchw.shape[1]
    x = jnp.transpose(logits_nchw, (0, 2, 3, 1)).astype(jnp.float32).reshape(-1, c)
    y = jnp.transpose(label_n1hw, (0, 2, 3, 1)).astype(jnp.int32).reshape(-1)
    logz = jax.scipy.special.logsumexp(x, axis=-1)
    true_logit = jnp.take_along_axis(x, y[:, None], axis=-1)[:, 0]
    return jnp.mean(logz - true_logit)


if __name__ == "__main__":
    key = jax.random.PRNGKey(0)
    ks = jax.random.split(key, 8)

    def _check(logits, label, tol, **kw):
        out = jax.block_until_ready(cross_entropy_with_logits(logits, label, **kw))
        ref = jax.block_until_ready(_reference(logits, label))
        assert jnp.allclose(out, ref, atol=tol, rtol=tol), (out, ref)

    # 1) module-sized example: N=2, C=2, H=W=16 (lane-aligned path, single step)
    logits = jax.random.normal(ks[0], (2, 2, 16, 16), dtype=jnp.float32)
    label = jax.random.randint(ks[1], (2, 1, 16, 16), 0, 2, dtype=jnp.int32)
    _check(logits, label, 1e-5)

    # 2) 2-D (rows x HW) tiling + ragged-row mask (forced small block budget)
    logits = jax.random.normal(ks[2], (20, 2, 16, 16), dtype=jnp.float32)
    label = jax.random.randint(ks[3], (20, 1, 16, 16), 0, 2).astype(jnp.int8)
    _check(logits, label, 1e-5, max_block_bytes=16 << 10)

    # 3) H*W not a multiple of 128 -> full-row fallback path, ragged rows
    logits = jax.random.normal(ks[4], (10, 2, 10, 10), dtype=jnp.float32)
    label = jax.random.randint(ks[5], (10, 1, 10, 10), 0, 2, dtype=jnp.int32)
    _check(logits, label, 1e-5, max_block_bytes=4 << 10)

    # 4) bf16 logits + int8 labels (bf16 VALU math on v6e/v7x, f32 on v5e)
    logits = jax.random.normal(ks[6], (4, 2, 16, 16), dtype=jnp.bfloat16)
    label = jax.random.randint(ks[7], (4, 1, 16, 16), 0, 2).astype(jnp.int8)
    _check(logits, label, 2e-2)

    print("KERNEL_OK")
</pallas_src>

<mosaic_0001>
module attributes {stable_mosaic.version = 11 : i64} {
  func.func @_ce_tiled_kernel(%arg0: i32, %arg1: i32, %arg2: memref<2x256xf32, #tpu.memory_space<vmem>>, %arg3: memref<2x256xf32, #tpu.memory_space<vmem>>, %arg4: memref<2x256xi32, #tpu.memory_space<vmem>>, %arg5: memref<1x1x8x128xf32, #tpu.memory_space<vmem>>) attributes {dimension_semantics = [#tpu.dimension_semantics<parallel>, #tpu.dimension_semantics<parallel>], iteration_bounds = array<i64: 1, 1>, scalar_prefetch = 0 : i64, scratch_operands = 0 : i64, tpu.core_type = #tpu.core_type<tc>, window_params = [{transform_indices = @transform_0, window_bounds = array<i64: 2, 256>}, {transform_indices = @transform_1, window_bounds = array<i64: 2, 256>}, {transform_indices = @transform_2, window_bounds = array<i64: 2, 256>}, {transform_indices = @transform_3, window_bounds = array<i64: 1, 1, 8, 128>}]} {
    %c0 = arith.constant 0 : index
    %c0_0 = arith.constant 0 : index
    %0 = vector.load %arg2[%c0, %c0_0] : memref<2x256xf32, #tpu.memory_space<vmem>>, vector<2x256xf32>
    %c0_1 = arith.constant 0 : index
    %c0_2 = arith.constant 0 : index
    %1 = vector.load %arg3[%c0_1, %c0_2] : memref<2x256xf32, #tpu.memory_space<vmem>>, vector<2x256xf32>
    %c0_3 = arith.constant 0 : index
    %c0_4 = arith.constant 0 : index
    %2 = vector.load %arg4[%c0_3, %c0_4] : memref<2x256xi32, #tpu.memory_space<vmem>>, vector<2x256xi32>
    %3 = arith.subf %1, %0 : vector<2x256xf32>
    %c0_i32 = arith.constant 0 : i32
    %4 = vector.broadcast %c0_i32 : i32 to vector<2x256xi32>
    %5 = arith.cmpi eq, %2, %4 : vector<2x256xi32>
    %cst = arith.constant 0.000000e+00 : f32
    %6 = vector.broadcast %cst : f32 to vector<2x256xf32>
    %7 = arith.subf %6, %3 : vector<2x256xf32>
    %8 = arith.select %5, %3, %7 : vector<2x256xi1>, vector<2x256xf32>
    %cst_5 = arith.constant 0.000000e+00 : f32
    %9 = vector.broadcast %cst_5 : f32 to vector<2x256xf32>
    %10 = arith.maximumf %8, %9 : vector<2x256xf32>
    %11 = math.absf %8 : vector<2x256xf32>
    %cst_6 = arith.constant 0.000000e+00 : f32
    %12 = vector.broadcast %cst_6 : f32 to vector<2x256xf32>
    %13 = arith.subf %12, %11 : vector<2x256xf32>
    %14 = math.exp %13 : vector<2x256xf32>
    %15 = math.log1p %14 : vector<2x256xf32>
    %16 = arith.addf %10, %15 : vector<2x256xf32>
    %cst_7 = arith.constant dense<0.000000e+00> : vector<2xf32>
    %17 = vector.multi_reduction <add>, %16, %cst_7 [1] : vector<2x256xf32> to vector<2xf32>
    %18 = vector.shape_cast %17 : vector<2xf32> to vector<2x1xf32>
    %19 = vector.shape_cast %18 : vector<2x1xf32> to vector<1x2x1xf32>
    %cst_8 = arith.constant dense<0.000000e+00> : vector<1xf32>
    %20 = vector.multi_reduction <add>, %19, %cst_8 [1, 2] : vector<1x2x1xf32> to vector<1xf32>
    %21 = vector.shape_cast %20 : vector<1xf32> to vector<1x1x1xf32>
    %22 = vector.extract %21[0, 0, 0] : f32 from vector<1x1x1xf32>
    %23 = vector.broadcast %22 : f32 to vector<1x1x8x128xf32>
    %c0_9 = arith.constant 0 : index
    %c0_10 = arith.constant 0 : index
    %c0_11 = arith.constant 0 : index
    %c0_12 = arith.constant 0 : index
    %24 = vector.load %arg5[%c0_9, %c0_10, %c0_11, %c0_12] : memref<1x1x8x128xf32, #tpu.memory_space<vmem>>, vector<1x1x8x128xf32>
    tpu.vector_store %arg5[%c0_9, %c0_10, %c0_11, %c0_12], %23 {strides = array<i32>} : memref<1x1x8x128xf32, #tpu.memory_space<vmem>>, vector<1x1x8x128xf32>,
    return
  }
  func.func @transform_0(%arg0: i32, %arg1: i32) -> (i32, i32) {
    %c0_i32 = arith.constant 0 : i32
    return %arg0, %arg1 : i32, i32
  }
  func.func @transform_1(%arg0: i32, %arg1: i32) -> (i32, i32) {
    %c1_i32 = arith.constant 1 : i32
    %0 = arith.addi %arg1, %c1_i32 : i32
    %c0_i32 = arith.constant 0 : i32
    return %arg0, %0 : i32, i32
  }
  func.func @transform_2(%arg0: i32, %arg1: i32) -> (i32, i32) {
    %c0_i32 = arith.constant 0 : i32
    return %arg0, %arg1 : i32, i32
  }
  func.func @transform_3(%arg0: i32, %arg1: i32) -> (i32, i32, i32, i32) {
    %c0_i32 = arith.constant 0 : i32
    %c0_i32_0 = arith.constant 0 : i32
    %c0_i32_1 = arith.constant 0 : i32
    return %arg0, %arg1, %c0_i32, %c0_i32_0 : i32, i32, i32, i32
  }
}

</mosaic_0001>

<llo_original>
// kernel: tpu_custom_call.1
$region0: #{tpu_custom_call.1}
  #allocation0 [shape = 'u32[]', space=smem, size = 0x4, offset = 0x4, fixed_abs, tag = 'smem constant byte address 0x4 - core index']
  #allocation1 [shape = 'u32[144,128]{1,0:T(1,128)}', space=vmem, size = 0x12000, scoped, tag = 'internal scratch']
  %s0 = inlined_call_operand.hbm [shape: f32[2,512], index: 0, kind: input, shape index: {}]
  %s1 = inlined_call_operand.hbm [shape: f32[2,512], index: 1, kind: input, shape index: {}]
  %s2 = inlined_call_operand.vmem [shape: s32[2,256], index: 2, kind: input, shape index: {}]
  %s3 = inlined_call_operand.hbm [shape: f32[1,1,8,128], index: 3, kind: output, shape index: {}]
  %s4 = sld [smem:[#allocation0]]
  $region30: #{tpu_custom_call.1} parent=0
    _
  %s6 = ssub.s32 1, %s4
  %s7 = scalar_select 0, %s6, %s4
  $region1: #{tpu_custom_call.1} parent=0
    #allocation2 [shape = 'u8[2048]{0}', space=vmem, size = 0x800, scoped, tag = 'input window, operand 0, single buffered']
    #allocation3 [shape = 's32[1]{0}', space=sflag, size = 0x4, scoped, tag = 'scoped memory for tpu_custom_call.1']
    #allocation4 [shape = 's32[1]{0}', space=sflag, size = 0x4, scoped, tag = 'scoped memory for tpu_custom_call.1']
    #allocation5 [shape = 'u8[2048]{0}', space=vmem, size = 0x800, scoped, tag = 'input window, operand 1, single buffered']
    #allocation6 [shape = 's32[1]{0}', space=sflag, size = 0x4, scoped, tag = 'scoped memory for tpu_custom_call.1']
    #allocation7 [shape = 'u8[4096]{0}', space=vmem, size = 0x1000, scoped, tag = 'output window, operand 0, single buffered']
    %8 = vsyncpa [#allocation3], 0
    %9 = vsyncpa [#allocation6], 0
    %10 = vsyncpa [#allocation4], 0
    // Predicated region
    $region2: #{tpu_custom_call.1} parent=1 // pred_check
      _
    $region3: #{tpu_custom_call.1} parent=1 // pred_check_branch
      %12 = sbr.rel (0) target = $region5
    $region4: #{tpu_custom_call.1} parent=1 // pred_region
      %s14 = ssub.s32 64, 64
      %15 = vsyncadd [#allocation3], %s14
      %s17 = sshll.u32 [#allocation2], 4
      %s18 = int_to_ptr.vmem [resolvable:$true] %s17
      %20 = dma.hbm_to_vmem [thread:$0]  %s0, 64, %s18, [#allocation3]
    $region5: #{tpu_custom_call.1} parent=1 // pred_fallthru
      _
    // Predicated region
    $region6: #{tpu_custom_call.1} parent=1 // pred_check
      _
    $region7: #{tpu_custom_call.1} parent=1 // pred_check_branch
      %22 = sbr.rel (0) target = $region9
    $region8: #{tpu_custom_call.1} parent=1 // pred_region
      %s23 = sadd.s32 0, 1
      %s24 = smul.u32 2, %s23
      %s26 = ssub.s32 64, 64
      %27 = vsyncadd [#allocation6], %s26
      %s28 = smul.addr %s24, 32
      %s29 = scalar_lea.hbm %s1, %s28
      %s31 = sshll.u32 [#allocation5], 4
      %s32 = int_to_ptr.vmem [resolvable:$true] %s31
      %34 = dma.hbm_to_vmem [thread:$0]  %s29, 64, %s32, [#allocation6]
    $region9: #{tpu_custom_call.1} parent=1 // pred_fallthru
      _
    // Predicated region
    $region10: #{tpu_custom_call.1} parent=1 // pred_check
      _
    $region11: #{tpu_custom_call.1} parent=1 // pred_check_branch
      %36 = sbr.rel (0) target = $region13
    $region12: #{tpu_custom_call.1} parent=1 // pred_region
      _
    $region13: #{tpu_custom_call.1} parent=1 // pred_fallthru
      _
    // Predicated region
    $region14: #{tpu_custom_call.1} parent=1 // pred_check
      _
    $region15: #{tpu_custom_call.1} parent=1 // pred_check_branch
      %38 = sbr.rel (0) target = $region17
    $region16: #{tpu_custom_call.1} parent=1 // pred_region
      %39 = dma.done [#allocation3], 64
    $region17: #{tpu_custom_call.1} parent=1 // pred_fallthru
      _
    // Predicated region
    $region18: #{tpu_custom_call.1} parent=1 // pred_check
      _
    $region19: #{tpu_custom_call.1} parent=1 // pred_check_branch
      %41 = sbr.rel (0) target = $region21
    $region20: #{tpu_custom_call.1} parent=1 // pred_region
      %42 = dma.done [#allocation6], 64
    $region21: #{tpu_custom_call.1} parent=1 // pred_fallthru
      _
    %s43 = sadd.s32 0, 1
    %s44 = smul.u32 2, %s43
    %v45 = vld [vmem:[#allocation2] sm:$0xf]
    %v46 = vld [vmem:[#allocation5] sm:$0xf]
    %v47 = vld [vmem:[%s2] sm:$0xf]
    %v48 = vsub.f32 %v46, %v45
    %vm49 = vcmp.eq.s32.totalorder %v47, 0
    %v50 = vsub.f32 0.0, %v48
    %v51 = vsel %vm49, %v48, %v50
    %v52 = vmax.f32 %v51, 0.0
    %v53 = vand.u32 2147483647, %v51
    %v54 = vsub.f32 0.0, %v53
    %v55 = vmul.f32 %v54, 1.442695
    %v56 = vpow.pop %v55
    %v57 = vadd.f32 %v56, 1.0
    %v58 = vlog2.pop %v57
    %v59 = vmul.f32 %v58, 0.6931472
    %v60 = vmul.f32 -0.5, %v56
    %v61 = vadd.f32 %v60, 1.0
    %v62 = vmul.f32 %v61, %v56
    %v63 = vand.u32 2147483647, %v56
    %vm64 = vcmp.lt.f32.partialorder %v63, 0.0004427343
    %v65 = vsel %vm64, %v62, %v59
    %v66 = vadd.f32 %v52, %v65
    %v69 = vunpack.c.l.s4 1983009808
    %v70 = vunpack.c.0.s8 %v69
    %v71 = vlaneseq
    %v72 = vshrl.u32 %v71, 7
    %v73 = vsub.s32 %v70, %v72
    %v74 = vrot.slane %v66, %v73
    %v75 = vcombine.high %v74, %v74
    %vm78 = vcmask 1041408
    %v79 = vsel %vm78, %v74, 0.0
    %v80 = vsel %vm78, %v75, 0.0
    %v81 = vadd.f32 %v79, %v80
    %82 = vadd.xlane.f32.xlu0 %v81
    %v83 = vpop.xlane.xlu0 %82
    %vm84 = vcmask 1024
    %v85 = vsel %vm84, %v83, 0.0
    %86 = vadd.xlane.f32.xlu0 %v85
    %v87 = vpop.xlane.xlu0 %86
    %v88 = vrot.slane %v87, 4
    %v89 = vadd.f32 %v87, %v88
    %v90 = vrot.slane %v89, 2
    %v91 = vadd.f32 %v89, %v90
    %v92 = vrot.slane %v91, 1
    %v93 = vadd.f32 %v91, %v92
    %s94 = vtos %v93
    %v95 = vstv %s94
    %96 = vst [vmem:[#allocation7] sm:$0xff] %v95
    // Predicated region
    $region22: #{tpu_custom_call.1} parent=1 // pred_check
      _
    $region23: #{tpu_custom_call.1} parent=1 // pred_check_branch
      %98 = sbr.rel (0) target = $region25
    $region24: #{tpu_custom_call.1} parent=1 // pred_region
      %s100 = ssub.s32 128, 128
      %101 = vsyncadd [#allocation4], %s100
      %s103 = sshll.u32 [#allocation7], 4
      %s104 = int_to_ptr.vmem [resolvable:$true] %s103
      %106 = dma.vmem_to_hbm [thread:$0]  %s104, 128, %s3, [#allocation4]
    $region25: #{tpu_custom_call.1} parent=1 // pred_fallthru
      _
    // Predicated region
    $region26: #{tpu_custom_call.1} parent=1 // pred_check
      _
    $region27: #{tpu_custom_call.1} parent=1 // pred_check_branch
      %108 = sbr.rel (0) target = $region29
    $region28: #{tpu_custom_call.1} parent=1 // pred_region
      %109 = dma.done [#allocation4], 128
    $region29: #{tpu_custom_call.1} parent=1 // pred_fallthru
      _
    %110 = vsyncpa [#allocation3], 1
    %111 = vsyncpa [#allocation6], 1
    %112 = vsyncpa [#allocation4], 1

</llo_original>
